<compile_context>
chip_gen: v7x
topology: tpu7x:2x2x1
jax: 0.10.0
libtpu: 0.0.40
codegen_flags: <defaults>
</compile_context>

<pallas_src>
import functools
import math

import jax
import jax.numpy as jnp
from jax.experimental import pallas as pl
from jax.experimental.pallas import tpu as pltpu


# ---------------------------------------------------------------------------
# Pallas kernel
# ---------------------------------------------------------------------------
def _stats_kernel(inv_n, inv_nm1, x_ref, mean_ref, std_ref, sum_ref, sq_ref):
    """Accumulate sum / sum-of-squares over the T (reduction) grid axis,
    finalize mean and unbiased std on the last reduction step."""
    t = pl.program_id(1)

    @pl.when(t == 0)
    def _init():
        sum_ref[...] = jnp.zeros_like(sum_ref)
        sq_ref[...] = jnp.zeros_like(sq_ref)

    xb = x_ref[...].astype(jnp.float32)          # (B, TM, TT)
    sum_ref[...] += jnp.sum(xb, axis=-1)         # (B, TM)
    sq_ref[...] += jnp.sum(xb * xb, axis=-1)

    @pl.when(t == pl.num_programs(1) - 1)
    def _finalize():
        s = sum_ref[...]
        mean = s * inv_n
        # unbiased variance (Bessel correction) to match torch.std default
        var = (sq_ref[...] - s * mean) * inv_nm1
        var = jnp.maximum(var, 0.0)
        mean_ref[...] = mean.astype(mean_ref.dtype)
        std_ref[...] = jnp.sqrt(var).astype(std_ref.dtype)


# ---------------------------------------------------------------------------
# Wrapper
# ---------------------------------------------------------------------------
def _largest_divisor(dim, base, cap):
    """Largest divisor of `dim` of the form base*2^k that is <= cap,
    falling back to the full dimension (which is always legal)."""
    best = None
    c = base
    while c <= min(dim, cap):
        if dim % c == 0:
            best = c
        c *= 2
    return best if best is not None else dim


def stats_pool_v2(x):
    """x: (B, C, D1, ...) -> (B, 2*C*D1) = concat([mean, unbiased std], axis=1)."""
    B, C, D1 = x.shape[0], x.shape[1], x.shape[2]
    M = C * D1
    T = int(math.prod(x.shape[3:]))
    x2 = x.reshape(B, M, T)                      # contiguous view, no HBM copy

    # Minor (reduction) block dim: multiple of 128, else full T.
    TT = _largest_divisor(T, 128, 2048)
    # Second-minor block dim: multiple of 8, capped so the double-buffered
    # input block stays well inside scoped VMEM (~4 MiB per buffer).
    budget = (4 * 1024 * 1024) // max(1, B * TT * x.dtype.itemsize)
    TM = _largest_divisor(M, 8, max(8, min(1024, budget)))

    inv_n = 1.0 / T
    inv_nm1 = 1.0 / (T - 1) if T > 1 else float("nan")
    kernel = functools.partial(_stats_kernel, inv_n, inv_nm1)

    mean, std = pl.pallas_call(
        kernel,
        out_shape=(jax.ShapeDtypeStruct((B, M), x.dtype),
                   jax.ShapeDtypeStruct((B, M), x.dtype)),
        grid=(M // TM, T // TT),
        in_specs=[pl.BlockSpec((B, TM, TT), lambda m, t: (0, m, t))],
        out_specs=(pl.BlockSpec((B, TM), lambda m, t: (0, m)),
                   pl.BlockSpec((B, TM), lambda m, t: (0, m))),
        scratch_shapes=[pltpu.VMEM((B, TM), jnp.float32),
                        pltpu.VMEM((B, TM), jnp.float32)],
        compiler_params=pltpu.CompilerParams(
            dimension_semantics=("parallel", "arbitrary")),
    )(x2)

    # torch.cat([mean, std], dim=1)
    return jnp.concatenate([mean, std], axis=1)


# ---------------------------------------------------------------------------
# Pure-JAX reference (for correctness check)
# ---------------------------------------------------------------------------
def stats_pool_v2_ref(x):
    B, C, D1 = x.shape[0], x.shape[1], x.shape[2]
    xr = x.reshape(B, C * D1, -1)
    mean = xr.mean(axis=2)
    std = jnp.std(xr, axis=2, ddof=1)            # unbiased, like torch.std
    return jnp.concatenate([mean, std], axis=1)


# ---------------------------------------------------------------------------
if __name__ == "__main__":
    key = jax.random.PRNGKey(0)
    x = jax.random.normal(key, (2, 4, 16, 16), jnp.float32)   # (B, C, H, W)

    out = jax.block_until_ready(stats_pool_v2(x))
    ref = jax.block_until_ready(stats_pool_v2_ref(x))

    assert out.shape == (2, 2 * 4 * 16), out.shape
    assert jnp.allclose(out, ref, rtol=1e-4, atol=1e-4), \
        float(jnp.max(jnp.abs(out - ref)))

    print("KERNEL_OK")
</pallas_src>

<mosaic_0001>
module attributes {stable_mosaic.version = 11 : i64} {
  func.func @_stats_kernel(%arg0: i32, %arg1: i32, %arg2: memref<2x64x16xf32, #tpu.memory_space<vmem>>, %arg3: memref<2x64xf32, #tpu.memory_space<vmem>>, %arg4: memref<2x64xf32, #tpu.memory_space<vmem>>, %arg5: memref<2x64xf32, #tpu.memory_space<vmem>>, %arg6: memref<2x64xf32, #tpu.memory_space<vmem>>) attributes {dimension_semantics = [#tpu.dimension_semantics<parallel>, #tpu.dimension_semantics<arbitrary>], iteration_bounds = array<i64: 1, 1>, scalar_prefetch = 0 : i64, scratch_operands = 2 : i64, tpu.core_type = #tpu.core_type<tc>, window_params = [{transform_indices = @transform_0, window_bounds = array<i64: 2, 64, 16>}, {transform_indices = @transform_1, window_bounds = array<i64: 2, 64>}, {transform_indices = @transform_2, window_bounds = array<i64: 2, 64>}]} {
    %c0_i32 = arith.constant 0 : i32
    %0 = arith.cmpi eq, %arg1, %c0_i32 : i32
    %1 = arith.extui %0 : i1 to i32
    %c0_i32_0 = arith.constant 0 : i32
    %2 = arith.cmpi ne, %1, %c0_i32_0 : i32
    scf.if %2 {
      %cst_14 = arith.constant 0.000000e+00 : f32
      %16 = vector.broadcast %cst_14 : f32 to vector<2x64xf32>
      %c0_15 = arith.constant 0 : index
      %c0_16 = arith.constant 0 : index
      %17 = vector.load %arg5[%c0_15, %c0_16] : memref<2x64xf32, #tpu.memory_space<vmem>>, vector<2x64xf32>
      tpu.vector_store %arg5[%c0_15, %c0_16], %16 {strides = array<i32>} : memref<2x64xf32, #tpu.memory_space<vmem>>, vector<2x64xf32>,
      %cst_17 = arith.constant 0.000000e+00 : f32
      %18 = vector.broadcast %cst_17 : f32 to vector<2x64xf32>
      %c0_18 = arith.constant 0 : index
      %c0_19 = arith.constant 0 : index
      %19 = vector.load %arg6[%c0_18, %c0_19] : memref<2x64xf32, #tpu.memory_space<vmem>>, vector<2x64xf32>
      tpu.vector_store %arg6[%c0_18, %c0_19], %18 {strides = array<i32>} : memref<2x64xf32, #tpu.memory_space<vmem>>, vector<2x64xf32>,
    } else {
    }
    %c0 = arith.constant 0 : index
    %c0_1 = arith.constant 0 : index
    %c0_2 = arith.constant 0 : index
    %3 = vector.load %arg2[%c0, %c0_1, %c0_2] : memref<2x64x16xf32, #tpu.memory_space<vmem>>, vector<2x64x16xf32>
    %c0_3 = arith.constant 0 : index
    %c0_4 = arith.constant 0 : index
    %4 = vector.load %arg5[%c0_3, %c0_4] : memref<2x64xf32, #tpu.memory_space<vmem>>, vector<2x64xf32>
    %cst = arith.constant dense<0.000000e+00> : vector<2x64xf32>
    %5 = vector.multi_reduction <add>, %3, %cst [2] : vector<2x64x16xf32> to vector<2x64xf32>
    %6 = arith.addf %4, %5 : vector<2x64xf32>
    %c0_5 = arith.constant 0 : index
    %c0_6 = arith.constant 0 : index
    %7 = vector.load %arg5[%c0_5, %c0_6] : memref<2x64xf32, #tpu.memory_space<vmem>>, vector<2x64xf32>
    tpu.vector_store %arg5[%c0_5, %c0_6], %6 {strides = array<i32>} : memref<2x64xf32, #tpu.memory_space<vmem>>, vector<2x64xf32>,
    %c0_7 = arith.constant 0 : index
    %c0_8 = arith.constant 0 : index
    %8 = vector.load %arg6[%c0_7, %c0_8] : memref<2x64xf32, #tpu.memory_space<vmem>>, vector<2x64xf32>
    %9 = arith.mulf %3, %3 : vector<2x64x16xf32>
    %cst_9 = arith.constant dense<0.000000e+00> : vector<2x64xf32>
    %10 = vector.multi_reduction <add>, %9, %cst_9 [2] : vector<2x64x16xf32> to vector<2x64xf32>
    %11 = arith.addf %8, %10 : vector<2x64xf32>
    %c0_10 = arith.constant 0 : index
    %c0_11 = arith.constant 0 : index
    %12 = vector.load %arg6[%c0_10, %c0_11] : memref<2x64xf32, #tpu.memory_space<vmem>>, vector<2x64xf32>
    tpu.vector_store %arg6[%c0_10, %c0_11], %11 {strides = array<i32>} : memref<2x64xf32, #tpu.memory_space<vmem>>, vector<2x64xf32>,
    %c0_i32_12 = arith.constant 0 : i32
    %13 = arith.cmpi eq, %arg1, %c0_i32_12 : i32
    %14 = arith.extui %13 : i1 to i32
    %c0_i32_13 = arith.constant 0 : i32
    %15 = arith.cmpi ne, %14, %c0_i32_13 : i32
    scf.if %15 {
      %c0_14 = arith.constant 0 : index
      %c0_15 = arith.constant 0 : index
      %16 = vector.load %arg5[%c0_14, %c0_15] : memref<2x64xf32, #tpu.memory_space<vmem>>, vector<2x64xf32>
      %cst_16 = arith.constant 6.250000e-02 : f32
      %17 = vector.broadcast %cst_16 : f32 to vector<2x64xf32>
      %18 = arith.mulf %16, %17 : vector<2x64xf32>
      %c0_17 = arith.constant 0 : index
      %c0_18 = arith.constant 0 : index
      %19 = vector.load %arg6[%c0_17, %c0_18] : memref<2x64xf32, #tpu.memory_space<vmem>>, vector<2x64xf32>
      %20 = arith.mulf %16, %18 : vector<2x64xf32>
      %21 = arith.subf %19, %20 : vector<2x64xf32>
      %cst_19 = arith.constant 0.0666666701 : f32
      %22 = vector.broadcast %cst_19 : f32 to vector<2x64xf32>
      %23 = arith.mulf %21, %22 : vector<2x64xf32>
      %cst_20 = arith.constant 0.000000e+00 : f32
      %24 = vector.broadcast %cst_20 : f32 to vector<2x64xf32>
      %25 = arith.maximumf %23, %24 : vector<2x64xf32>
      %c0_21 = arith.constant 0 : index
      %c0_22 = arith.constant 0 : index
      %26 = vector.load %arg3[%c0_21, %c0_22] : memref<2x64xf32, #tpu.memory_space<vmem>>, vector<2x64xf32>
      tpu.vector_store %arg3[%c0_21, %c0_22], %18 {strides = array<i32>} : memref<2x64xf32, #tpu.memory_space<vmem>>, vector<2x64xf32>,
      %27 = math.sqrt %25 : vector<2x64xf32>
      %c0_23 = arith.constant 0 : index
      %c0_24 = arith.constant 0 : index
      %28 = vector.load %arg4[%c0_23, %c0_24] : memref<2x64xf32, #tpu.memory_space<vmem>>, vector<2x64xf32>
      tpu.vector_store %arg4[%c0_23, %c0_24], %27 {strides = array<i32>} : memref<2x64xf32, #tpu.memory_space<vmem>>, vector<2x64xf32>,
    } else {
    }
    return
  }
  func.func @transform_0(%arg0: i32, %arg1: i32) -> (i32, i32, i32) {
    %c0_i32 = arith.constant 0 : i32
    %c0_i32_0 = arith.constant 0 : i32
    return %c0_i32, %arg0, %arg1 : i32, i32, i32
  }
  func.func @transform_1(%arg0: i32, %arg1: i32) -> (i32, i32) {
    %c0_i32 = arith.constant 0 : i32
    %c0_i32_0 = arith.constant 0 : i32
    return %c0_i32, %arg0 : i32, i32
  }
  func.func @transform_2(%arg0: i32, %arg1: i32) -> (i32, i32) {
    %c0_i32 = arith.constant 0 : i32
    %c0_i32_0 = arith.constant 0 : i32
    return %c0_i32, %arg0 : i32, i32
  }
}

</mosaic_0001>

<llo_original>
// kernel: tpu_custom_call.1
$region0: #{tpu_custom_call.1}
  #allocation0 [shape = 'u32[]', space=smem, size = 0x4, offset = 0x4, fixed_abs, tag = 'smem constant byte address 0x4 - core index']
  #allocation1 [shape = 'u32[144,128]{1,0:T(1,128)}', space=vmem, size = 0x12000, scoped, tag = 'internal scratch']
  #allocation2 [shape = 'f32[2,64]{1,0:T(2,128)}', space=vmem, size = 0x400, scoped, tag = 'scratch operand']
  #allocation3 [shape = 'f32[2,64]{1,0:T(2,128)}', space=vmem, size = 0x400, scoped, tag = 'scratch operand']
  %s0 = inlined_call_operand.vmem [shape: f32[2,64,16], index: 0, kind: input, shape index: {}]
  %s1 = inlined_call_operand.hbm [shape: f32[2,64], index: 1, kind: output, shape index: {0}]
  %s2 = inlined_call_operand.hbm [shape: f32[2,64], index: 2, kind: output, shape index: {1}]
  %3 = xla_tuple %s1, %s2
  %s4 = sld [smem:[#allocation0]]
  $region30: #{tpu_custom_call.1} parent=0
    _
  %s6 = ssub.s32 1, %s4
  %s7 = scalar_select 0, %s6, %s4
  $region1: #{tpu_custom_call.1} parent=0
    #allocation4 [shape = 'u8[1024]{0}', space=vmem, size = 0x400, scoped, tag = 'output window, operand 0, single buffered']
    #allocation5 [shape = 's32[1]{0}', space=sflag, size = 0x4, scoped, tag = 'scoped memory for tpu_custom_call.1']
    #allocation6 [shape = 'u8[1024]{0}', space=vmem, size = 0x400, scoped, tag = 'output window, operand 1, single buffered']
    #allocation7 [shape = 's32[1]{0}', space=sflag, size = 0x4, scoped, tag = 'scoped memory for tpu_custom_call.1']
    %8 = vsyncpa [#allocation5], 0
    %9 = vsyncpa [#allocation7], 0
    // Predicated region
    $region2: #{tpu_custom_call.1} parent=1 // pred_check
      _
    $region3: #{tpu_custom_call.1} parent=1 // pred_check_branch
      %11 = sbr.rel (0) target = $region5
    $region4: #{tpu_custom_call.1} parent=1 // pred_region
      _
    $region5: #{tpu_custom_call.1} parent=1 // pred_fallthru
      _
    %p12 = scmp.eq.s32.totalorder 0, 0
    // Predicated region
    $region6: #{tpu_custom_call.1} parent=1 // pred_check
      %p13 = pneg %p12
    $region7: #{tpu_custom_call.1} parent=1 // pred_check_branch
      %15 = sbr.rel (%p13) target = $region9
    $region8: #{tpu_custom_call.1} parent=1 // pred_region
      %vm16 = vcmask 517120
      %17 = vst.msk [vmem:[#allocation2] sm:$0x3] %vm16, 0.0
      %18 = vst.msk [vmem:[#allocation3] sm:$0x3] %vm16, 0.0
    $region9: #{tpu_custom_call.1} parent=1 // pred_fallthru
      _
    %v19 = vld [vmem:[%s0] sm:$0xff]
    %v20 = vld [vmem:[%s0 + $0x8] sm:$0xff]
    %v21 = vld [vmem:[%s0 + $0x10] sm:$0xff]
    %v22 = vld [vmem:[%s0 + $0x18] sm:$0xff]
    %v23 = vld [vmem:[%s0 + $0x20] sm:$0xff]
    %v24 = vld [vmem:[%s0 + $0x28] sm:$0xff]
    %v25 = vld [vmem:[%s0 + $0x30] sm:$0xff]
    %v26 = vld [vmem:[%s0 + $0x38] sm:$0xff]
    %v27 = vld [vmem:[%s0 + $0x40] sm:$0xff]
    %v28 = vld [vmem:[%s0 + $0x48] sm:$0xff]
    %v29 = vld [vmem:[%s0 + $0x50] sm:$0xff]
    %v30 = vld [vmem:[%s0 + $0x58] sm:$0xff]
    %v31 = vld [vmem:[%s0 + $0x60] sm:$0xff]
    %v32 = vld [vmem:[%s0 + $0x68] sm:$0xff]
    %v33 = vld [vmem:[%s0 + $0x70] sm:$0xff]
    %v34 = vld [vmem:[%s0 + $0x78] sm:$0xff]
    %v35 = vld [vmem:[#allocation2] sm:$0x3]
    %vm36 = vcmask 130048
    %v37 = vsel %vm36, %v19, 0.0
    %38 = vadd.xlane.f32.xlu0 %v37
    %v39 = vpop.xlane.xlu0 %38
    %v40 = vsel %vm36, %v20, 0.0
    %41 = vadd.xlane.f32.xlu0 %v40
    %v42 = vpop.xlane.xlu0 %41
    %v43 = vsel %vm36, %v21, 0.0
    %44 = vadd.xlane.f32.xlu0 %v43
    %v45 = vpop.xlane.xlu0 %44
    %v46 = vsel %vm36, %v22, 0.0
    %47 = vadd.xlane.f32.xlu0 %v46
    %v48 = vpop.xlane.xlu0 %47
    %v49 = vsel %vm36, %v23, 0.0
    %50 = vadd.xlane.f32.xlu0 %v49
    %v51 = vpop.xlane.xlu0 %50
    %v52 = vsel %vm36, %v24, 0.0
    %53 = vadd.xlane.f32.xlu0 %v52
    %v54 = vpop.xlane.xlu0 %53
    %v55 = vsel %vm36, %v25, 0.0
    %56 = vadd.xlane.f32.xlu0 %v55
    %v57 = vpop.xlane.xlu0 %56
    %v58 = vsel %vm36, %v26, 0.0
    %59 = vadd.xlane.f32.xlu0 %v58
    %v60 = vpop.xlane.xlu0 %59
    %v61 = vsel %vm36, %v27, 0.0
    %62 = vadd.xlane.f32.xlu0 %v61
    %v63 = vpop.xlane.xlu0 %62
    %v64 = vsel %vm36, %v28, 0.0
    %65 = vadd.xlane.f32.xlu0 %v64
    %v66 = vpop.xlane.xlu0 %65
    %v67 = vsel %vm36, %v29, 0.0
    %68 = vadd.xlane.f32.xlu0 %v67
    %v69 = vpop.xlane.xlu0 %68
    %v70 = vsel %vm36, %v30, 0.0
    %71 = vadd.xlane.f32.xlu0 %v70
    %v72 = vpop.xlane.xlu0 %71
    %v73 = vsel %vm36, %v31, 0.0
    %74 = vadd.xlane.f32.xlu0 %v73
    %v75 = vpop.xlane.xlu0 %74
    %v76 = vsel %vm36, %v32, 0.0
    %77 = vadd.xlane.f32.xlu0 %v76
    %v78 = vpop.xlane.xlu0 %77
    %v79 = vsel %vm36, %v33, 0.0
    %80 = vadd.xlane.f32.xlu0 %v79
    %v81 = vpop.xlane.xlu0 %80
    %v82 = vsel %vm36, %v34, 0.0
    %83 = vadd.xlane.f32.xlu0 %v82
    %v84 = vpop.xlane.xlu0 %83
    %v101 = vlaneseq
    %v102 = vand.u32 %v101, 127
    %v103 = vlaneseq
    %v104 = vshrl.u32 %v103, 7
    %v105 = vsub.s32 %v102, %v104
    %v106 = vrot.slane %v39, %v105
    %v107 = vadd.s32 %v102, 4294967288
    %v108 = vlaneseq
    %v109 = vshrl.u32 %v108, 7
    %v110 = vsub.s32 %v107, %v109
    %v111 = vrot.slane %v42, %v110
    %vm112 = vcmask 130112
    %v113 = vsel %vm112, %v111, %v106
    %v114 = vadd.s32 %v102, 4294967280
    %v115 = vlaneseq
    %v116 = vshrl.u32 %v115, 7
    %v117 = vsub.s32 %v114, %v116
    %v118 = vrot.slane %v45, %v117
    %vm119 = vcmask 195712
    %v120 = vsel %vm119, %v118, %v113
    %v121 = vadd.s32 %v102, 4294967272
    %v122 = vlaneseq
    %v123 = vshrl.u32 %v122, 7
    %v124 = vsub.s32 %v121, %v123
    %v125 = vrot.slane %v48, %v124
    %vm126 = vcmask 261312
    %v127 = vsel %vm126, %v125, %v120
    %v128 = vadd.s32 %v102, 4294967264
    %v129 = vlaneseq
    %v130 = vshrl.u32 %v129, 7
    %v131 = vsub.s32 %v128, %v130
    %v132 = vrot.slane %v51, %v131
    %vm133 = vcmask 326912
    %v134 = vsel %vm133, %v132, %v127
    %v135 = vadd.s32 %v102, 4294967256
    %v136 = vlaneseq
    %v137 = vshrl.u32 %v136, 7
    %v138 = vsub.s32 %v135, %v137
    %v139 = vrot.slane %v54, %v138
    %vm140 = vcmask 392512
    %v141 = vsel %vm140, %v139, %v134
    %v142 = vadd.s32 %v102, 4294967248
    %v143 = vlaneseq
    %v144 = vshrl.u32 %v143, 7
    %v145 = vsub.s32 %v142, %v144
    %v146 = vrot.slane %v57, %v145
    %vm147 = vcmask 458112
    %v148 = vsel %vm147, %v146, %v141
    %v149 = vadd.s32 %v102, 4294967240
    %v150 = vlaneseq
    %v151 = vshrl.u32 %v150, 7
    %v152 = vsub.s32 %v149, %v151
    %v153 = vrot.slane %v60, %v152
    %vm154 = vcmask 523712
    %v155 = vsel %vm154, %v153, %v148
    %v156 = vlaneseq
    %v157 = vshrl.u32 %v156, 7
    %v158 = vsub.s32 %v102, %v157
    %v159 = vrot.slane %v63, %v158
    %v160 = vlaneseq
    %v161 = vshrl.u32 %v160, 7
    %v162 = vsub.s32 %v107, %v161
    %v163 = vrot.slane %v66, %v162
    %v164 = vsel %vm112, %v163, %v159
    %v165 = vlaneseq
    %v166 = vshrl.u32 %v165, 7
    %v167 = vsub.s32 %v114, %v166
    %v168 = vrot.slane %v69, %v167
    %v169 = vsel %vm119, %v168, %v164
    %v170 = vlaneseq
    %v171 = vshrl.u32 %v170, 7
    %v172 = vsub.s32 %v121, %v171
    %v173 = vrot.slane %v72, %v172
    %v174 = vsel %vm126, %v173, %v169
    %v175 = vlaneseq
    %v176 = vshrl.u32 %v175, 7
    %v177 = vsub.s32 %v128, %v176
    %v178 = vrot.slane %v75, %v177
    %v179 = vsel %vm133, %v178, %v174
    %v180 = vlaneseq
    %v181 = vshrl.u32 %v180, 7
    %v182 = vsub.s32 %v135, %v181
    %v183 = vrot.slane %v78, %v182
    %v184 = vsel %vm140, %v183, %v179
    %v185 = vlaneseq
    %v186 = vshrl.u32 %v185, 7
    %v187 = vsub.s32 %v142, %v186
    %v188 = vrot.slane %v81, %v187
    %v189 = vsel %vm147, %v188, %v184
    %v190 = vlaneseq
    %v191 = vshrl.u32 %v190, 7
    %v192 = vsub.s32 %v149, %v191
    %v193 = vrot.slane %v84, %v192
    %v194 = vsel %vm154, %v193, %v189
    %vm195 = vcmask 1041409
    %v196 = vsel %vm195, %v194, %v155
    %v198 = vadd.f32 %v35, %v196
    %vm199 = vcmask 517120
    %200 = vst.msk [vmem:[#allocation2] sm:$0x3] %vm199, %v198
    %v201 = vld [vmem:[#allocation3] sm:$0x3]
    %v202 = vmul.f32 %v19, %v19
    %v203 = vmul.f32 %v20, %v20
    %v204 = vmul.f32 %v21, %v21
    %v205 = vmul.f32 %v22, %v22
    %v206 = vmul.f32 %v23, %v23
    %v207 = vmul.f32 %v24, %v24
    %v208 = vmul.f32 %v25, %v25
    %v209 = vmul.f32 %v26, %v26
    %v210 = vmul.f32 %v27, %v27
    %v211 = vmul.f32 %v28, %v28
    %v212 = vmul.f32 %v29, %v29
    %v213 = vmul.f32 %v30, %v30
    %v214 = vmul.f32 %v31, %v31
    %v215 = vmul.f32 %v32, %v32
    %v216 = vmul.f32 %v33, %v33
    %v217 = vmul.f32 %v34, %v34
    %v218 = vsel %vm36, %v202, 0.0
    %219 = vadd.xlane.f32.xlu0 %v218
    %v220 = vpop.xlane.xlu0 %219
    %v221 = vsel %vm36, %v203, 0.0
    %222 = vadd.xlane.f32.xlu0 %v221
    %v223 = vpop.xlane.xlu0 %222
    %v224 = vsel %vm36, %v204, 0.0
    %225 = vadd.xlane.f32.xlu0 %v224
    %v226 = vpop.xlane.xlu0 %225
    %v227 = vsel %vm36, %v205, 0.0
    %228 = vadd.xlane.f32.xlu0 %v227
    %v229 = vpop.xlane.xlu0 %228
    %v230 = vsel %vm36, %v206, 0.0
    %231 = vadd.xlane.f32.xlu0 %v230
    %v232 = vpop.xlane.xlu0 %231
    %v233 = vsel %vm36, %v207, 0.0
    %234 = vadd.xlane.f32.xlu0 %v233
    %v235 = vpop.xlane.xlu0 %234
    %v236 = vsel %vm36, %v208, 0.0
    %237 = vadd.xlane.f32.xlu0 %v236
    %v238 = vpop.xlane.xlu0 %237
    %v239 = vsel %vm36, %v209, 0.0
    %240 = vadd.xlane.f32.xlu0 %v239
    %v241 = vpop.xlane.xlu0 %240
    %v242 = vsel %vm36, %v210, 0.0
    %243 = vadd.xlane.f32.xlu0 %v242
    %v244 = vpop.xlane.xlu0 %243
    %v245 = vsel %vm36, %v211, 0.0
    %246 = vadd.xlane.f32.xlu0 %v245
    %v247 = vpop.xlane.xlu0 %246
    %v248 = vsel %vm36, %v212, 0.0
    %249 = vadd.xlane.f32.xlu0 %v248
    %v250 = vpop.xlane.xlu0 %249
    %v251 = vsel %vm36, %v213, 0.0
    %252 = vadd.xlane.f32.xlu0 %v251
    %v253 = vpop.xlane.xlu0 %252
    %v254 = vsel %vm36, %v214, 0.0
    %255 = vadd.xlane.f32.xlu0 %v254
    %v256 = vpop.xlane.xlu0 %255
    %v257 = vsel %vm36, %v215, 0.0
    %258 = vadd.xlane.f32.xlu0 %v257
    %v259 = vpop.xlane.xlu0 %258
    %v260 = vsel %vm36, %v216, 0.0
    %261 = vadd.xlane.f32.xlu0 %v260
    %v262 = vpop.xlane.xlu0 %261
    %v263 = vsel %vm36, %v217, 0.0
    %264 = vadd.xlane.f32.xlu0 %v263
    %v265 = vpop.xlane.xlu0 %264
    %v282 = vlaneseq
    %v283 = vshrl.u32 %v282, 7
    %v284 = vsub.s32 %v102, %v283
    %v285 = vrot.slane %v220, %v284
    %v286 = vlaneseq
    %v287 = vshrl.u32 %v286, 7
    %v288 = vsub.s32 %v107, %v287
    %v289 = vrot.slane %v223, %v288
    %v290 = vsel %vm112, %v289, %v285
    %v291 = vlaneseq
    %v292 = vshrl.u32 %v291, 7
    %v293 = vsub.s32 %v114, %v292
    %v294 = vrot.slane %v226, %v293
    %v295 = vsel %vm119, %v294, %v290
    %v296 = vlaneseq
    %v297 = vshrl.u32 %v296, 7
    %v298 = vsub.s32 %v121, %v297
    %v299 = vrot.slane %v229, %v298
    %v300 = vsel %vm126, %v299, %v295
    %v301 = vlaneseq
    %v302 = vshrl.u32 %v301, 7
    %v303 = vsub.s32 %v128, %v302
    %v304 = vrot.slane %v232, %v303
    %v305 = vsel %vm133, %v304, %v300
    %v306 = vlaneseq
    %v307 = vshrl.u32 %v306, 7
    %v308 = vsub.s32 %v135, %v307
    %v309 = vrot.slane %v235, %v308
    %v310 = vsel %vm140, %v309, %v305
    %v311 = vlaneseq
    %v312 = vshrl.u32 %v311, 7
    %v313 = vsub.s32 %v142, %v312
    %v314 = vrot.slane %v238, %v313
    %v315 = vsel %vm147, %v314, %v310
    %v316 = vlaneseq
    %v317 = vshrl.u32 %v316, 7
    %v318 = vsub.s32 %v149, %v317
    %v319 = vrot.slane %v241, %v318
    %v320 = vsel %vm154, %v319, %v315
    %v321 = vlaneseq
    %v322 = vshrl.u32 %v321, 7
    %v323 = vsub.s32 %v102, %v322
    %v324 = vrot.slane %v244, %v323
    %v325 = vlaneseq
    %v326 = vshrl.u32 %v325, 7
    %v327 = vsub.s32 %v107, %v326
    %v328 = vrot.slane %v247, %v327
    %v329 = vsel %vm112, %v328, %v324
    %v330 = vlaneseq
    %v331 = vshrl.u32 %v330, 7
    %v332 = vsub.s32 %v114, %v331
    %v333 = vrot.slane %v250, %v332
    %v334 = vsel %vm119, %v333, %v329
    %v335 = vlaneseq
    %v336 = vshrl.u32 %v335, 7
    %v337 = vsub.s32 %v121, %v336
    %v338 = vrot.slane %v253, %v337
    %v339 = vsel %vm126, %v338, %v334
    %v340 = vlaneseq
    %v341 = vshrl.u32 %v340, 7
    %v342 = vsub.s32 %v128, %v341
    %v343 = vrot.slane %v256, %v342
    %v344 = vsel %vm133, %v343, %v339
    %v345 = vlaneseq
    %v346 = vshrl.u32 %v345, 7
    %v347 = vsub.s32 %v135, %v346
    %v348 = vrot.slane %v259, %v347
    %v349 = vsel %vm140, %v348, %v344
    %v350 = vlaneseq
    %v351 = vshrl.u32 %v350, 7
    %v352 = vsub.s32 %v142, %v351
    %v353 = vrot.slane %v262, %v352
    %v354 = vsel %vm147, %v353, %v349
    %v355 = vlaneseq
    %v356 = vshrl.u32 %v355, 7
    %v357 = vsub.s32 %v149, %v356
    %v358 = vrot.slane %v265, %v357
    %v359 = vsel %vm154, %v358, %v354
    %v360 = vsel %vm195, %v359, %v320
    %v362 = vadd.f32 %v201, %v360
    %363 = vst.msk [vmem:[#allocation3] sm:$0x3] %vm199, %v362
    // Predicated region
    $region10: #{tpu_custom_call.1} parent=1 // pred_check
      %p364 = pneg %p12
    $region11: #{tpu_custom_call.1} parent=1 // pred_check_branch
      %366 = sbr.rel (%p364) target = $region13
    $region12: #{tpu_custom_call.1} parent=1 // pred_region
      %v367 = vld [vmem:[#allocation2] sm:$0x3]
      %v368 = vmul.f32 %v367, 0.0625
      %v369 = vld [vmem:[#allocation3] sm:$0x3]
      %v370 = vmul.f32 %v367, %v368
      %v371 = vsub.f32 %v369, %v370
      %v372 = vmul.f32 %v371, 0.06666667
      %v373 = vmax.f32 %v372, 0.0
      %374 = vst.msk [vmem:[#allocation4] sm:$0x3] %vm199, %v368
      %v375 = vrsqrt.pop %v373
      %v376 = vmul.f32 %v373, %v375
      %vm377 = vcmp.eq.f32.partialorder %v373, inf
      %v378 = vsel %vm377, %v373, %v376
      %vm379 = vcmp.eq.f32.partialorder %v373, 0.0
      %v380 = vand.u32 %v373, 2147483648
      %v381 = vsel %vm379, %v380, %v378
      %382 = vst.msk [vmem:[#allocation6] sm:$0x3] %vm199, %v381
    $region13: #{tpu_custom_call.1} parent=1 // pred_fallthru
      _
    // Predicated region
    $region14: #{tpu_custom_call.1} parent=1 // pred_check
      _
    $region15: #{tpu_custom_call.1} parent=1 // pred_check_branch
      %384 = sbr.rel (0) target = $region17
    $region16: #{tpu_custom_call.1} parent=1 // pred_region
      %s386 = ssub.s32 32, 32
      %387 = vsyncadd [#allocation5], %s386
      %s389 = sshll.u32 [#allocation4], 4
      %s390 = int_to_ptr.vmem [resolvable:$true] %s389
      %392 = dma.vmem_to_hbm [thread:$0]  %s390, 32, %s1, [#allocation5]
    $region17: #{tpu_custom_call.1} parent=1 // pred_fallthru
      _
    // Predicated region
    $region18: #{tpu_custom_call.1} parent=1 // pred_check
      _
    $region19: #{tpu_custom_call.1} parent=1 // pred_check_branch
      %394 = sbr.rel (0) target = $region21
    $region20: #{tpu_custom_call.1} parent=1 // pred_region
      %s396 = ssub.s32 32, 32
      %397 = vsyncadd [#allocation7], %s396
      %s399 = sshll.u32 [#allocation6], 4
      %s400 = int_to_ptr.vmem [resolvable:$true] %s399
      %402 = dma.vmem_to_hbm [thread:$0]  %s400, 32, %s2, [#allocation7]
    $region21: #{tpu_custom_call.1} parent=1 // pred_fallthru
      _
    // Predicated region
    $region22: #{tpu_custom_call.1} parent=1 // pred_check
      _
    $region23: #{tpu_custom_call.1} parent=1 // pred_check_branch
      %404 = sbr.rel (0) target = $region25
    $region24: #{tpu_custom_call.1} parent=1 // pred_region
      %405 = dma.done [#allocation5], 32
    $region25: #{tpu_custom_call.1} parent=1 // pred_fallthru
      _
    // Predicated region
    $region26: #{tpu_custom_call.1} parent=1 // pred_check
      _
    $region27: #{tpu_custom_call.1} parent=1 // pred_check_branch
      %407 = sbr.rel (0) target = $region29
    $region28: #{tpu_custom_call.1} parent=1 // pred_region
      %408 = dma.done [#allocation7], 32
    $region29: #{tpu_custom_call.1} parent=1 // pred_fallthru
      _
    %409 = vsyncpa [#allocation5], 1
    %410 = vsyncpa [#allocation7], 1

</llo_original>
